<compile_context>
chip_gen: v6e
topology: v6e:2x2x1
jax: 0.10.0
libtpu: 0.0.40
codegen_flags: <defaults>
</compile_context>

<pallas_src>
import jax
import jax.numpy as jnp
from jax.experimental import pallas as pl
from jax.experimental.pallas import tpu as pltpu


_LANE = 128
_SUBLANE = 8


def _round_up(x: int, m: int) -> int:
    return (x + m - 1) // m * m


def _make_fused_mlp_kernel(num_hidden: int):
    """y = (...relu(x @ W0 + b0) @ W1 + b1 ...) for one batch tile.

    num_hidden = num_layers - 1 ([O,O] layers after the first).  The per-layer
    loop is a static Python unroll (num_layers is small and known at trace
    time), so the LLO scheduler sees one straight-line body per tile.
    """
    if num_hidden == 0:
        def kernel(x_ref, w0_ref, b_ref, o_ref):
            acc = jnp.dot(x_ref[...], w0_ref[...],
                          preferred_element_type=jnp.float32)
            acc = acc + b_ref[0]                       # (1, O_pad) f32 broadcast
            o_ref[...] = acc.astype(o_ref.dtype)
        return kernel

    def kernel(x_ref, w0_ref, wr_ref, b_ref, o_ref):
        acc = jnp.dot(x_ref[...], w0_ref[...],
                      preferred_element_type=jnp.float32)
        acc = acc + b_ref[0]
        for j in range(num_hidden):                    # static unroll
            h = jnp.maximum(acc, 0.0).astype(jnp.bfloat16)   # ReLU on resident f32
            acc = jnp.dot(h, wr_ref[j], preferred_element_type=jnp.float32)
            acc = acc + b_ref[j + 1]
        o_ref[...] = acc.astype(o_ref.dtype)
    return kernel


def fused_mlp_pallas(x, w0_pad, w_rest_pad, b_pad, *, out_dim):
    """x: [N, D] float. w0_pad: [D_pad, O_pad] bf16. w_rest_pad: [L-1, O_pad, O_pad]
    bf16 (leading dim may be 0). b_pad: [L, 1, O_pad] f32. Returns [N, out_dim] f32."""
    N, D = x.shape
    D_pad, O_pad = w0_pad.shape
    L = b_pad.shape[0]
    num_hidden = L - 1

    # Batch tile: 256 rows fills the 256-wide MXU on v6e/v7x (2x128 passes on
    # v5e); shrink to the sublane-rounded batch for tiny inputs.
    TM = min(256, _round_up(N, _SUBLANE))
    N_pad = _round_up(N, TM)

    # Zero-pad batch/features (exact math: padded rows/cols contribute zeros)
    # and cast to bf16 (halves HBM/VMEM bytes on the activation stream).
    x_p = jnp.pad(x.astype(jnp.bfloat16), ((0, N_pad - N), (0, D_pad - D)))

    grid = (N_pad // TM,)

    in_specs = [
        pl.BlockSpec((TM, D_pad), lambda i: (i, 0)),        # x tile (double-buffered)
        pl.BlockSpec((D_pad, O_pad), lambda i: (0, 0)),     # W0 resident across grid
    ]
    args = [x_p, w0_pad]
    if num_hidden > 0:
        in_specs.append(
            pl.BlockSpec((num_hidden, O_pad, O_pad), lambda i: (0, 0, 0)))
        args.append(w_rest_pad)
    in_specs.append(pl.BlockSpec((L, 1, O_pad), lambda i: (0, 0, 0)))
    args.append(b_pad)

    # VMEM budget (sized against v7x's 64 MiB physical): resident weights/bias
    # + double-buffered x/out tiles, 2x headroom, 16 MiB floor / 64 MiB cap.
    resident = (w0_pad.size + (w_rest_pad.size if num_hidden else 0)) * 2 \
        + b_pad.size * 4
    tiles = 2 * (TM * D_pad * 2 + TM * O_pad * 4)
    vmem_limit = int(min(max(2 * (resident + tiles), 16 << 20), 64 << 20))
    # TODO(synk): for production-sized dims (resident weights > ~tens of MiB)
    # add a K-reduction grid axis with a VMEM f32 accumulator instead of a
    # single resident weight block.

    flops = 2 * N_pad * D_pad * O_pad + 2 * num_hidden * N_pad * O_pad * O_pad
    bytes_accessed = (x_p.size * 2 + w0_pad.size * 2
                      + (w_rest_pad.size * 2 if num_hidden else 0)
                      + b_pad.size * 4 + N_pad * O_pad * 4)

    out = pl.pallas_call(
        _make_fused_mlp_kernel(num_hidden),
        out_shape=jax.ShapeDtypeStruct((N_pad, O_pad), jnp.float32),
        grid_spec=pltpu.PrefetchScalarGridSpec(
            num_scalar_prefetch=0,
            grid=grid,
            in_specs=in_specs,
            out_specs=pl.BlockSpec((TM, O_pad), lambda i: (i, 0)),
        ),
        compiler_params=pltpu.CompilerParams(
            dimension_semantics=("parallel",),   # shard batch tiles across 2 TCs
            vmem_limit_bytes=vmem_limit,
        ),
        cost_estimate=pl.CostEstimate(flops=flops, transcendentals=0,
                                      bytes_accessed=bytes_accessed),
    )(*args)
    return out[:N, :out_dim]


class LinearProjection:
    """JAX/Pallas port of the PyTorch LinearProjection module (eval semantics)."""

    def __init__(self, input_dim, output_dim, num_layers, drop_probs, key):
        self.input_dim = input_dim
        self.output_dim = output_dim
        self.num_layers = num_layers
        self.drop_probs = drop_probs  # TODO(synk): training-mode dropout not applied (eval semantics)

        # f32 master parameters (PyTorch nn.Linear default init; weight stored
        # pre-transposed as [in, out]).
        self.params = []
        in_dim = input_dim
        for _ in range(num_layers):
            key, wk, bk = jax.random.split(key, 3)
            bound = 1.0 / float(in_dim) ** 0.5
            w_t = jax.random.uniform(wk, (in_dim, output_dim), jnp.float32,
                                     minval=-bound, maxval=bound)
            b = jax.random.uniform(bk, (output_dim,), jnp.float32,
                                   minval=-bound, maxval=bound)
            self.params.append((w_t, b))
            in_dim = output_dim

        # Padded, lane-dense, bf16 kernel copies (stay resident in VMEM).
        D_pad = _round_up(input_dim, _LANE)
        O_pad = _round_up(output_dim, _LANE)

        w0 = jnp.zeros((D_pad, O_pad), jnp.bfloat16)
        w0 = w0.at[:input_dim, :output_dim].set(
            self.params[0][0].astype(jnp.bfloat16))
        self.w0_pad = w0

        if num_layers > 1:
            wr = jnp.zeros((num_layers - 1, O_pad, O_pad), jnp.bfloat16)
            for j in range(1, num_layers):
                wr = wr.at[j - 1, :output_dim, :output_dim].set(
                    self.params[j][0].astype(jnp.bfloat16))
            self.w_rest_pad = wr
        else:
            self.w_rest_pad = jnp.zeros((0, O_pad, O_pad), jnp.bfloat16)

        bp = jnp.zeros((num_layers, 1, O_pad), jnp.float32)
        for j in range(num_layers):
            bp = bp.at[j, 0, :output_dim].set(self.params[j][1])
        self.b_pad = bp

    def __call__(self, x):
        return self.forward(x)

    def forward(self, x):
        # x: [N, input_dim] -> [N, output_dim], all layers in one fused kernel.
        return fused_mlp_pallas(x, self.w0_pad, self.w_rest_pad, self.b_pad,
                                out_dim=self.output_dim)


def _reference_forward(module: LinearProjection, x):
    # Pure-JAX reference mirroring the kernel's numerics (bf16 inputs/weights,
    # f32 accumulation, f32 bias/ReLU).
    h = x
    for i, (w_t, b) in enumerate(module.params):
        if i > 0:
            h = jnp.maximum(h, 0.0)
        h = jnp.dot(h.astype(jnp.bfloat16), w_t.astype(jnp.bfloat16),
                    preferred_element_type=jnp.float32) + b
    return h


if __name__ == "__main__":
    key = jax.random.PRNGKey(0)
    key, xk, pk = jax.random.split(key, 3)

    batch = 4
    input_dim = 32
    output_dim = 64
    num_layers = 3
    drop_probs = [0.1]

    module = LinearProjection(input_dim, output_dim, num_layers, drop_probs, pk)
    x = jax.random.normal(xk, (batch, input_dim), jnp.float32)

    out = module(x)
    out = jax.block_until_ready(out)

    ref = _reference_forward(module, x)
    assert out.shape == (batch, output_dim), out.shape
    assert jnp.allclose(out, ref, atol=2e-2, rtol=2e-2), "mismatch vs reference"

    print("KERNEL_OK")
</pallas_src>

<mosaic_0001>
module attributes {stable_mosaic.version = 11 : i64} {
  func.func @kernel(%arg0: i32, %arg1: memref<8x128xbf16, #tpu.memory_space<vmem>>, %arg2: memref<128x128xbf16, #tpu.memory_space<vmem>>, %arg3: memref<2x128x128xbf16, #tpu.memory_space<vmem>>, %arg4: memref<3x1x128xf32, #tpu.memory_space<vmem>>, %arg5: memref<8x128xf32, #tpu.memory_space<vmem>>) attributes {dimension_semantics = [#tpu.dimension_semantics<parallel>], iteration_bounds = array<i64: 1>, scalar_prefetch = 0 : i64, scratch_operands = 0 : i64, tpu.core_type = #tpu.core_type<tc>, window_params = [{transform_indices = @transform_0, window_bounds = array<i64: 8, 128>}, {pipeline_mode = #tpu.pipeline_mode<synchronous>, transform_indices = @transform_1, window_bounds = array<i64: 128, 128>}, {pipeline_mode = #tpu.pipeline_mode<synchronous>, transform_indices = @transform_2, window_bounds = array<i64: 2, 128, 128>}, {pipeline_mode = #tpu.pipeline_mode<synchronous>, transform_indices = @transform_3, window_bounds = array<i64: 3, 1, 128>}, {transform_indices = @transform_4, window_bounds = array<i64: 8, 128>}]} {
    %c0 = arith.constant 0 : index
    %c0_0 = arith.constant 0 : index
    %0 = vector.load %arg1[%c0, %c0_0] : memref<8x128xbf16, #tpu.memory_space<vmem>>, vector<8x128xbf16>
    %c0_1 = arith.constant 0 : index
    %c0_2 = arith.constant 0 : index
    %1 = vector.load %arg2[%c0_1, %c0_2] : memref<128x128xbf16, #tpu.memory_space<vmem>>, vector<128x128xbf16>
    %cst = arith.constant dense<0.000000e+00> : vector<8x128xf32>
    %2 = tpu.matmul %0, %1, %cst {dimension_numbers = #tpu.dot_dimension_numbers<[1], [0], [0], [1], [0, 0, 1, 1], [], []>} : vector<8x128xbf16>, vector<128x128xbf16>, vector<8x128xf32> -> vector<8x128xf32>
    %c0_3 = arith.constant 0 : index
    %c0_4 = arith.constant 0 : index
    %c0_5 = arith.constant 0 : index
    %3 = vector.load %arg4[%c0_3, %c0_4, %c0_5] : memref<3x1x128xf32, #tpu.memory_space<vmem>>, vector<1x1x128xf32>
    %4 = vector.shape_cast %3 : vector<1x1x128xf32> to vector<1x128xf32>
    %5 = vector.broadcast %4 : vector<1x128xf32> to vector<8x128xf32>
    %6 = arith.addf %2, %5 : vector<8x128xf32>
    %cst_6 = arith.constant 0.000000e+00 : f32
    %7 = vector.broadcast %cst_6 : f32 to vector<8x128xf32>
    %8 = arith.maximumf %6, %7 : vector<8x128xf32>
    %9 = arith.truncf %8 : vector<8x128xf32> to vector<8x128xbf16>
    %c0_7 = arith.constant 0 : index
    %c0_8 = arith.constant 0 : index
    %c0_9 = arith.constant 0 : index
    %10 = vector.load %arg3[%c0_7, %c0_8, %c0_9] : memref<2x128x128xbf16, #tpu.memory_space<vmem>>, vector<1x128x128xbf16>
    %11 = vector.shape_cast %10 : vector<1x128x128xbf16> to vector<128x128xbf16>
    %cst_10 = arith.constant dense<0.000000e+00> : vector<8x128xf32>
    %12 = tpu.matmul %9, %11, %cst_10 {dimension_numbers = #tpu.dot_dimension_numbers<[1], [0], [0], [1], [0, 0, 1, 1], [], []>} : vector<8x128xbf16>, vector<128x128xbf16>, vector<8x128xf32> -> vector<8x128xf32>
    %c1 = arith.constant 1 : index
    %c0_11 = arith.constant 0 : index
    %c0_12 = arith.constant 0 : index
    %13 = vector.load %arg4[%c1, %c0_11, %c0_12] : memref<3x1x128xf32, #tpu.memory_space<vmem>>, vector<1x1x128xf32>
    %14 = vector.shape_cast %13 : vector<1x1x128xf32> to vector<1x128xf32>
    %15 = vector.broadcast %14 : vector<1x128xf32> to vector<8x128xf32>
    %16 = arith.addf %12, %15 : vector<8x128xf32>
    %cst_13 = arith.constant 0.000000e+00 : f32
    %17 = vector.broadcast %cst_13 : f32 to vector<8x128xf32>
    %18 = arith.maximumf %16, %17 : vector<8x128xf32>
    %19 = arith.truncf %18 : vector<8x128xf32> to vector<8x128xbf16>
    %c1_14 = arith.constant 1 : index
    %c0_15 = arith.constant 0 : index
    %c0_16 = arith.constant 0 : index
    %20 = vector.load %arg3[%c1_14, %c0_15, %c0_16] : memref<2x128x128xbf16, #tpu.memory_space<vmem>>, vector<1x128x128xbf16>
    %21 = vector.shape_cast %20 : vector<1x128x128xbf16> to vector<128x128xbf16>
    %cst_17 = arith.constant dense<0.000000e+00> : vector<8x128xf32>
    %22 = tpu.matmul %19, %21, %cst_17 {dimension_numbers = #tpu.dot_dimension_numbers<[1], [0], [0], [1], [0, 0, 1, 1], [], []>} : vector<8x128xbf16>, vector<128x128xbf16>, vector<8x128xf32> -> vector<8x128xf32>
    %c2 = arith.constant 2 : index
    %c0_18 = arith.constant 0 : index
    %c0_19 = arith.constant 0 : index
    %23 = vector.load %arg4[%c2, %c0_18, %c0_19] : memref<3x1x128xf32, #tpu.memory_space<vmem>>, vector<1x1x128xf32>
    %24 = vector.shape_cast %23 : vector<1x1x128xf32> to vector<1x128xf32>
    %25 = vector.broadcast %24 : vector<1x128xf32> to vector<8x128xf32>
    %26 = arith.addf %22, %25 : vector<8x128xf32>
    %c0_20 = arith.constant 0 : index
    %c0_21 = arith.constant 0 : index
    %27 = vector.load %arg5[%c0_20, %c0_21] : memref<8x128xf32, #tpu.memory_space<vmem>>, vector<8x128xf32>
    tpu.vector_store %arg5[%c0_20, %c0_21], %26 {strides = array<i32>} : memref<8x128xf32, #tpu.memory_space<vmem>>, vector<8x128xf32>,
    return
  }
  func.func @transform_0(%arg0: i32) -> (i32, i32) {
    %c0_i32 = arith.constant 0 : i32
    %c0_i32_0 = arith.constant 0 : i32
    return %arg0, %c0_i32 : i32, i32
  }
  func.func @transform_1(%arg0: i32) -> (i32, i32) {
    %c0_i32 = arith.constant 0 : i32
    %c0_i32_0 = arith.constant 0 : i32
    %c0_i32_1 = arith.constant 0 : i32
    return %c0_i32, %c0_i32_0 : i32, i32
  }
  func.func @transform_2(%arg0: i32) -> (i32, i32, i32) {
    %c0_i32 = arith.constant 0 : i32
    %c0_i32_0 = arith.constant 0 : i32
    %c0_i32_1 = arith.constant 0 : i32
    %c0_i32_2 = arith.constant 0 : i32
    return %c0_i32, %c0_i32_0, %c0_i32_1 : i32, i32, i32
  }
  func.func @transform_3(%arg0: i32) -> (i32, i32, i32) {
    %c0_i32 = arith.constant 0 : i32
    %c0_i32_0 = arith.constant 0 : i32
    %c0_i32_1 = arith.constant 0 : i32
    %c0_i32_2 = arith.constant 0 : i32
    return %c0_i32, %c0_i32_0, %c0_i32_1 : i32, i32, i32
  }
  func.func @transform_4(%arg0: i32) -> (i32, i32) {
    %c0_i32 = arith.constant 0 : i32
    %c0_i32_0 = arith.constant 0 : i32
    return %arg0, %c0_i32 : i32, i32
  }
}

</mosaic_0001>

<llo_original>
// kernel: tpu_custom_call.1
$region0: #{tpu_custom_call.1}
  #allocation0 [shape = 'u32[]', space=smem, size = 0x4, offset = 0x4, fixed_abs, tag = 'smem constant byte address 0x4 - core index']
  #allocation1 [shape = 'u32[144,128]{1,0:T(1,128)}', space=vmem, size = 0x12000, scoped, tag = 'internal scratch']
  %s0 = inlined_call_operand.hbm [shape: bf16[8,128], index: 0, kind: input, shape index: {}]
  %s1 = inlined_call_operand.hbm [shape: bf16[128,128], index: 1, kind: input, shape index: {}]
  %s2 = inlined_call_operand.hbm [shape: bf16[2,128,128], index: 2, kind: input, shape index: {}]
  %s3 = inlined_call_operand.vmem [shape: f32[3,1,128], index: 3, kind: input, shape index: {}]
  %s4 = inlined_call_operand.hbm [shape: f32[8,128], index: 4, kind: output, shape index: {}]
  %s5 = sld [smem:[#allocation0]]
  $region38: #{tpu_custom_call.1} parent=0
    _
  %s7 = ssub.s32 1, %s5
  %s8 = scalar_select 0, %s7, %s5
  $region1: #{tpu_custom_call.1} parent=0
    #allocation2 [shape = 'u8[2048]{0}', space=vmem, size = 0x800, scoped, tag = 'input window, operand 0, single buffered']
    #allocation3 [shape = 's32[1]{0}', space=sflag, size = 0x4, scoped, tag = 'scoped memory for tpu_custom_call.1']
    #allocation4 [shape = 's32[1]{0}', space=sflag, size = 0x4, scoped, tag = 'scoped memory for tpu_custom_call.1']
    #allocation5 [shape = 'u8[32768]{0}', space=vmem, size = 0x8000, scoped, tag = 'input window, operand 1, single buffered']
    #allocation6 [shape = 's32[1]{0}', space=sflag, size = 0x4, scoped, tag = 'scoped memory for tpu_custom_call.1']
    #allocation7 [shape = 'u8[65536]{0}', space=vmem, size = 0x10000, scoped, tag = 'input window, operand 2, single buffered']
    #allocation8 [shape = 'u8[4096]{0}', space=vmem, size = 0x1000, scoped, tag = 'output window, operand 0, single buffered']
    %9 = vsyncpa [#allocation3], 0
    %10 = vsyncpa [#allocation6], 0
    %11 = vsyncpa [#allocation4], 0
    // Predicated region
    $region2: #{tpu_custom_call.1} parent=1 // pred_check
      _
    $region3: #{tpu_custom_call.1} parent=1 // pred_check_branch
      %13 = sbr.rel (0) target = $region5
    $region4: #{tpu_custom_call.1} parent=1 // pred_region
      %s15 = ssub.s32 64, 64
      %16 = vsyncadd [#allocation3], %s15
      %s18 = sshll.u32 [#allocation2], 4
      %s19 = int_to_ptr.vmem [resolvable:$true] %s18
      %21 = dma.hbm_to_vmem [thread:$0]  %s0, 64, %s19, [#allocation3]
    $region5: #{tpu_custom_call.1} parent=1 // pred_fallthru
      _
    // Predicated region
    $region6: #{tpu_custom_call.1} parent=1 // pred_check
      _
    $region7: #{tpu_custom_call.1} parent=1 // pred_check_branch
      %23 = sbr.rel (0) target = $region9
    $region8: #{tpu_custom_call.1} parent=1 // pred_region
      %s25 = ssub.s32 1024, 1024
      %26 = vsyncadd [#allocation6], %s25
      %s27 = sshll.u32 [#allocation5], 4
      %s28 = int_to_ptr.vmem [resolvable:$true] %s27
      %33 = dma.hbm_to_vmem [thread:$0]  %s1, 1024, %s28, [#allocation6], 64, 64, 4
    $region9: #{tpu_custom_call.1} parent=1 // pred_fallthru
      _
    // Predicated region
    $region10: #{tpu_custom_call.1} parent=1 // pred_check
      _
    $region11: #{tpu_custom_call.1} parent=1 // pred_check_branch
      %35 = sbr.rel (0) target = $region13
    $region12: #{tpu_custom_call.1} parent=1 // pred_region
      %s37 = ssub.s32 2048, 2048
      %38 = vsyncadd [#allocation6], %s37
      %s39 = sshll.u32 [#allocation7], 4
      %s40 = int_to_ptr.vmem [resolvable:$true] %s39
      %45 = dma.hbm_to_vmem [thread:$0]  %s2, 2048, %s40, [#allocation6], 64, 64, 4
    $region13: #{tpu_custom_call.1} parent=1 // pred_fallthru
      _
    // Predicated region
    $region14: #{tpu_custom_call.1} parent=1 // pred_check
      _
    $region15: #{tpu_custom_call.1} parent=1 // pred_check_branch
      %47 = sbr.rel (0) target = $region17
    $region16: #{tpu_custom_call.1} parent=1 // pred_region
      _
    $region17: #{tpu_custom_call.1} parent=1 // pred_fallthru
      _
    // Predicated region
    $region18: #{tpu_custom_call.1} parent=1 // pred_check
      _
    $region19: #{tpu_custom_call.1} parent=1 // pred_check_branch
      %49 = sbr.rel (0) target = $region21
    $region20: #{tpu_custom_call.1} parent=1 // pred_region
      %50 = dma.done [#allocation3], 64
    $region21: #{tpu_custom_call.1} parent=1 // pred_fallthru
      _
    // Predicated region
    $region22: #{tpu_custom_call.1} parent=1 // pred_check
      _
    $region23: #{tpu_custom_call.1} parent=1 // pred_check_branch
      %52 = sbr.rel (0) target = $region25
    $region24: #{tpu_custom_call.1} parent=1 // pred_region
      %53 = dma.done [#allocation6], 1024
    $region25: #{tpu_custom_call.1} parent=1 // pred_fallthru
      _
    // Predicated region
    $region26: #{tpu_custom_call.1} parent=1 // pred_check
      _
    $region27: #{tpu_custom_call.1} parent=1 // pred_check_branch
      %55 = sbr.rel (0) target = $region29
    $region28: #{tpu_custom_call.1} parent=1 // pred_region
      %56 = dma.done [#allocation6], 2048
    $region29: #{tpu_custom_call.1} parent=1 // pred_fallthru
      _
    %v58 = vld [vmem:[#allocation2] sm:$0xf]
    %v59 = vld [vmem:[#allocation5] sm:$0xf]
    %v60 = vld [vmem:[#allocation5 + $0x4] sm:$0xf]
    %v61 = vld [vmem:[#allocation5 + $0x8] sm:$0xf]
    %v62 = vld [vmem:[#allocation5 + $0xc] sm:$0xf]
    %v63 = vld [vmem:[#allocation5 + $0x10] sm:$0xf]
    %v64 = vld [vmem:[#allocation5 + $0x14] sm:$0xf]
    %v65 = vld [vmem:[#allocation5 + $0x18] sm:$0xf]
    %v66 = vld [vmem:[#allocation5 + $0x1c] sm:$0xf]
    %v67 = vld [vmem:[#allocation5 + $0x20] sm:$0xf]
    %v68 = vld [vmem:[#allocation5 + $0x24] sm:$0xf]
    %v69 = vld [vmem:[#allocation5 + $0x28] sm:$0xf]
    %v70 = vld [vmem:[#allocation5 + $0x2c] sm:$0xf]
    %v71 = vld [vmem:[#allocation5 + $0x30] sm:$0xf]
    %v72 = vld [vmem:[#allocation5 + $0x34] sm:$0xf]
    %v73 = vld [vmem:[#allocation5 + $0x38] sm:$0xf]
    %v74 = vld [vmem:[#allocation5 + $0x3c] sm:$0xf]
    %v75 = vld [vmem:[%s3] sm:$0x1]
    %v77 = vlaneseq
    %v78 = vshrl.u32 %v77, 7
    %v79 = vsub.s32 0, %v78
    %v80 = vrot.slane %v75, %v79
    %v98 = vunpack.c.l.b16 %v59
    %v99 = vunpack.c.l.b16 %v60
    %v100 = vunpack.c.l.b16 %v61
    %v101 = vunpack.c.l.b16 %v62
    %v102 = vunpack.c.l.b16 %v63
    %v103 = vunpack.c.l.b16 %v64
    %v104 = vunpack.c.l.b16 %v65
    %v105 = vunpack.c.l.b16 %v66
    %v106 = vunpack.c.l.b16 %v67
    %v107 = vunpack.c.l.b16 %v68
    %v108 = vunpack.c.l.b16 %v69
    %v109 = vunpack.c.l.b16 %v70
    %v110 = vunpack.c.l.b16 %v71
    %v111 = vunpack.c.l.b16 %v72
    %v112 = vunpack.c.l.b16 %v73
    %v113 = vunpack.c.l.b16 %v74
    %v114 = vpack.c.b16 %v99, %v98
    %v115 = vpack.c.b16 %v101, %v100
    %v116 = vpack.c.b16 %v103, %v102
    %v117 = vpack.c.b16 %v105, %v104
    %v118 = vpack.c.b16 %v107, %v106
    %v119 = vpack.c.b16 %v109, %v108
    %v120 = vpack.c.b16 %v111, %v110
    %v121 = vpack.c.b16 %v113, %v112
    %130 = vmatprep.subr.bf16.mxu0 0
    %131 = vmatpush1.bf16.msra.mxu0 %v121
    %132 = vmatprep.subr.bf16.mxu0 0
    %133 = vmatpush1.bf16.msra.mxu0 %v120
    %134 = vmatprep.subr.bf16.mxu0 0
    %135 = vmatpush1.bf16.msra.mxu0 %v119
    %136 = vmatprep.subr.bf16.mxu0 0
    %137 = vmatpush1.bf16.msra.mxu0 %v118
    %138 = vmatprep.subr.bf16.mxu0 0
    %139 = vmatpush1.bf16.msra.mxu0 %v117
    %140 = vmatprep.subr.bf16.mxu0 0
    %141 = vmatpush1.bf16.msra.mxu0 %v116
    %142 = vmatprep.subr.bf16.mxu0 0
    %143 = vmatpush1.bf16.msra.mxu0 %v115
    %144 = vmatprep.subr.bf16.mxu0 0
    %145 = vmatpush1.bf16.msra.mxu0 %v114
    %146 = vmatprep.subr.bf16.mxu0 0
    %147 = vmatpush2.bf16.msra.mxu0 0
    %148 = vmatprep.subr.bf16.mxu0 0
    %149 = vmatpush2.bf16.msra.mxu0 0
    %150 = vmatprep.subr.bf16.mxu0 0
    %151 = vmatpush2.bf16.msra.mxu0 0
    %152 = vmatprep.subr.bf16.mxu0 0
    %153 = vmatpush2.bf16.msra.mxu0 0
    %154 = vmatprep.subr.bf16.mxu0 0
    %155 = vmatpush2.bf16.msra.mxu0 0
    %156 = vmatprep.subr.bf16.mxu0 0
    %157 = vmatpush2.bf16.msra.mxu0 0
    %158 = vmatprep.subr.bf16.mxu0 0
    %159 = vmatpush2.bf16.msra.mxu0 0
    %160 = vmatprep.subr.bf16.mxu0 0
    %161 = vmatpush2.bf16.msra.mxu0 0
    %162 = vmatprep.mubr.bf16.mxu0 0
    %163 = vmatmul.mubr.bf16.gmra.mxu0 %v58
    %v164 = vpop.f32.mrf.mxu0
    %v165 = vadd.f32 %v80, %v164
    %v166 = vpop.f32.mrf.mxu0
    %v167 = vpop.f32.mrf.mxu0
    %v168 = vpop.f32.mrf.mxu0
    %169 = vdwg.mxu0
    %v170 = vmax.f32 %v165, 0.0
    %v171 = vpack.c.bf16 %v170, %v170
    %v172 = vld [vmem:[#allocation7] sm:$0xf]
    %v173 = vld [vmem:[#allocation7 + $0x4] sm:$0xf]
    %v174 = vld [vmem:[#allocation7 + $0x8] sm:$0xf]
    %v175 = vld [vmem:[#allocation7 + $0xc] sm:$0xf]
    %v176 = vld [vmem:[#allocation7 + $0x10] sm:$0xf]
    %v177 = vld [vmem:[#allocation7 + $0x14] sm:$0xf]
    %v178 = vld [vmem:[#allocation7 + $0x18] sm:$0xf]
    %v179 = vld [vmem:[#allocation7 + $0x1c] sm:$0xf]
    %v180 = vld [vmem:[#allocation7 + $0x20] sm:$0xf]
    %v181 = vld [vmem:[#allocation7 + $0x24] sm:$0xf]
    %v182 = vld [vmem:[#allocation7 + $0x28] sm:$0xf]
    %v183 = vld [vmem:[#allocation7 + $0x2c] sm:$0xf]
    %v184 = vld [vmem:[#allocation7 + $0x30] sm:$0xf]
    %v185 = vld [vmem:[#allocation7 + $0x34] sm:$0xf]
    %v186 = vld [vmem:[#allocation7 + $0x38] sm:$0xf]
    %v187 = vld [vmem:[#allocation7 + $0x3c] sm:$0xf]
    %s188 = scalar_lea.vmem %s3, 1
    %v189 = vld [vmem:[%s188] sm:$0x1]
    %v191 = vlaneseq
    %v192 = vshrl.u32 %v191, 7
    %v193 = vsub.s32 0, %v192
    %v194 = vrot.slane %v189, %v193
    %v212 = vunpack.c.l.b16 %v172
    %v213 = vunpack.c.l.b16 %v173
    %v214 = vunpack.c.l.b16 %v174
    %v215 = vunpack.c.l.b16 %v175
    %v216 = vunpack.c.l.b16 %v176
    %v217 = vunpack.c.l.b16 %v177
    %v218 = vunpack.c.l.b16 %v178
    %v219 = vunpack.c.l.b16 %v179
    %v220 = vunpack.c.l.b16 %v180
    %v221 = vunpack.c.l.b16 %v181
    %v222 = vunpack.c.l.b16 %v182
    %v223 = vunpack.c.l.b16 %v183
    %v224 = vunpack.c.l.b16 %v184
    %v225 = vunpack.c.l.b16 %v185
    %v226 = vunpack.c.l.b16 %v186
    %v227 = vunpack.c.l.b16 %v187
    %v228 = vpack.c.b16 %v213, %v212
    %v229 = vpack.c.b16 %v215, %v214
    %v230 = vpack.c.b16 %v217, %v216
    %v231 = vpack.c.b16 %v219, %v218
    %v232 = vpack.c.b16 %v221, %v220
    %v233 = vpack.c.b16 %v223, %v222
    %v234 = vpack.c.b16 %v225, %v224
    %v235 = vpack.c.b16 %v227, %v226
    %244 = vmatprep.subr.bf16.mxu0 0
    %245 = vmatpush1.bf16.msra.mxu0 %v235
    %246 = vmatprep.subr.bf16.mxu0 0
    %247 = vmatpush1.bf16.msra.mxu0 %v234
    %248 = vmatprep.subr.bf16.mxu0 0
    %249 = vmatpush1.bf16.msra.mxu0 %v233
    %250 = vmatprep.subr.bf16.mxu0 0
    %251 = vmatpush1.bf16.msra.mxu0 %v232
    %252 = vmatprep.subr.bf16.mxu0 0
    %253 = vmatpush1.bf16.msra.mxu0 %v231
    %254 = vmatprep.subr.bf16.mxu0 0
    %255 = vmatpush1.bf16.msra.mxu0 %v230
    %256 = vmatprep.subr.bf16.mxu0 0
    %257 = vmatpush1.bf16.msra.mxu0 %v229
    %258 = vmatprep.subr.bf16.mxu0 0
    %259 = vmatpush1.bf16.msra.mxu0 %v228
    %260 = vmatprep.subr.bf16.mxu0 0
    %261 = vmatpush2.bf16.msra.mxu0 0
    %262 = vmatprep.subr.bf16.mxu0 0
    %263 = vmatpush2.bf16.msra.mxu0 0
    %264 = vmatprep.subr.bf16.mxu0 0
    %265 = vmatpush2.bf16.msra.mxu0 0
    %266 = vmatprep.subr.bf16.mxu0 0
    %267 = vmatpush2.bf16.msra.mxu0 0
    %268 = vmatprep.subr.bf16.mxu0 0
    %269 = vmatpush2.bf16.msra.mxu0 0
    %270 = vmatprep.subr.bf16.mxu0 0
    %271 = vmatpush2.bf16.msra.mxu0 0
    %272 = vmatprep.subr.bf16.mxu0 0
    %273 = vmatpush2.bf16.msra.mxu0 0
    %274 = vmatprep.subr.bf16.mxu0 0
    %275 = vmatpush2.bf16.msra.mxu0 0
    %276 = vmatprep.mubr.bf16.mxu0 0
    %277 = vmatmul.mubr.bf16.gmra.mxu0 %v171
    %v278 = vpop.f32.mrf.mxu0
    %v279 = vadd.f32 %v194, %v278
    %v280 = vpop.f32.mrf.mxu0
    %v281 = vpop.f32.mrf.mxu0
    %v282 = vpop.f32.mrf.mxu0
    %283 = vdwg.mxu0
    %v284 = vmax.f32 %v279, 0.0
    %v285 = vpack.c.bf16 %v284, %v284
    %s286 = scalar_lea.vmem [#allocation7], 64
    %v287 = vld [vmem:[%s286] sm:$0xf]
    %v288 = vld [vmem:[%s286 + $0x4] sm:$0xf]
    %v289 = vld [vmem:[%s286 + $0x8] sm:$0xf]
    %v290 = vld [vmem:[%s286 + $0xc] sm:$0xf]
    %v291 = vld [vmem:[%s286 + $0x10] sm:$0xf]
    %v292 = vld [vmem:[%s286 + $0x14] sm:$0xf]
    %v293 = vld [vmem:[%s286 + $0x18] sm:$0xf]
    %v294 = vld [vmem:[%s286 + $0x1c] sm:$0xf]
    %v295 = vld [vmem:[%s286 + $0x20] sm:$0xf]
    %v296 = vld [vmem:[%s286 + $0x24] sm:$0xf]
    %v297 = vld [vmem:[%s286 + $0x28] sm:$0xf]
    %v298 = vld [vmem:[%s286 + $0x2c] sm:$0xf]
    %v299 = vld [vmem:[%s286 + $0x30] sm:$0xf]
    %v300 = vld [vmem:[%s286 + $0x34] sm:$0xf]
    %v301 = vld [vmem:[%s286 + $0x38] sm:$0xf]
    %v302 = vld [vmem:[%s286 + $0x3c] sm:$0xf]
    %s303 = scalar_lea.vmem %s3, 2
    %v304 = vld [vmem:[%s303] sm:$0x1]
    %v306 = vlaneseq
    %v307 = vshrl.u32 %v306, 7
    %v308 = vsub.s32 0, %v307
    %v309 = vrot.slane %v304, %v308
    %v327 = vunpack.c.l.b16 %v287
    %v328 = vunpack.c.l.b16 %v288
    %v329 = vunpack.c.l.b16 %v289
    %v330 = vunpack.c.l.b16 %v290
    %v331 = vunpack.c.l.b16 %v291
    %v332 = vunpack.c.l.b16 %v292
    %v333 = vunpack.c.l.b16 %v293
    %v334 = vunpack.c.l.b16 %v294
    %v335 = vunpack.c.l.b16 %v295
    %v336 = vunpack.c.l.b16 %v296
    %v337 = vunpack.c.l.b16 %v297
    %v338 = vunpack.c.l.b16 %v298
    %v339 = vunpack.c.l.b16 %v299
    %v340 = vunpack.c.l.b16 %v300
    %v341 = vunpack.c.l.b16 %v301
    %v342 = vunpack.c.l.b16 %v302
    %v343 = vpack.c.b16 %v328, %v327
    %v344 = vpack.c.b16 %v330, %v329
    %v345 = vpack.c.b16 %v332, %v331
    %v346 = vpack.c.b16 %v334, %v333
    %v347 = vpack.c.b16 %v336, %v335
    %v348 = vpack.c.b16 %v338, %v337
    %v349 = vpack.c.b16 %v340, %v339
    %v350 = vpack.c.b16 %v342, %v341
    %359 = vmatprep.subr.bf16.mxu0 0
    %360 = vmatpush1.bf16.msra.mxu0 %v350
    %361 = vmatprep.subr.bf16.mxu0 0
    %362 = vmatpush1.bf16.msra.mxu0 %v349
    %363 = vmatprep.subr.bf16.mxu0 0
    %364 = vmatpush1.bf16.msra.mxu0 %v348
    %365 = vmatprep.subr.bf16.mxu0 0
    %366 = vmatpush1.bf16.msra.mxu0 %v347
    %367 = vmatprep.subr.bf16.mxu0 0
    %368 = vmatpush1.bf16.msra.mxu0 %v346
    %369 = vmatprep.subr.bf16.mxu0 0
    %370 = vmatpush1.bf16.msra.mxu0 %v345
    %371 = vmatprep.subr.bf16.mxu0 0
    %372 = vmatpush1.bf16.msra.mxu0 %v344
    %373 = vmatprep.subr.bf16.mxu0 0
    %374 = vmatpush1.bf16.msra.mxu0 %v343
    %375 = vmatprep.subr.bf16.mxu0 0
    %376 = vmatpush2.bf16.msra.mxu0 0
    %377 = vmatprep.subr.bf16.mxu0 0
    %378 = vmatpush2.bf16.msra.mxu0 0
    %379 = vmatprep.subr.bf16.mxu0 0
    %380 = vmatpush2.bf16.msra.mxu0 0
    %381 = vmatprep.subr.bf16.mxu0 0
    %382 = vmatpush2.bf16.msra.mxu0 0
    %383 = vmatprep.subr.bf16.mxu0 0
    %384 = vmatpush2.bf16.msra.mxu0 0
    %385 = vmatprep.subr.bf16.mxu0 0
    %386 = vmatpush2.bf16.msra.mxu0 0
    %387 = vmatprep.subr.bf16.mxu0 0
    %388 = vmatpush2.bf16.msra.mxu0 0
    %389 = vmatprep.subr.bf16.mxu0 0
    %390 = vmatpush2.bf16.msra.mxu0 0
    %391 = vmatprep.mubr.bf16.mxu0 0
    %392 = vmatmul.mubr.bf16.gmra.mxu0 %v285
    %v393 = vpop.f32.mrf.mxu0
    %v394 = vadd.f32 %v309, %v393
    %v395 = vpop.f32.mrf.mxu0
    %v396 = vpop.f32.mrf.mxu0
    %v397 = vpop.f32.mrf.mxu0
    %398 = vdwg.mxu0
    %399 = vst [vmem:[#allocation8] sm:$0xff] %v394
    // Predicated region
    $region30: #{tpu_custom_call.1} parent=1 // pred_check
      _
    $region31: #{tpu_custom_call.1} parent=1 // pred_check_branch
      %401 = sbr.rel (0) target = $region33
    $region32: #{tpu_custom_call.1} parent=1 // pred_region
      %s403 = ssub.s32 128, 128
      %404 = vsyncadd [#allocation4], %s403
      %s406 = sshll.u32 [#allocation8], 4
      %s407 = int_to_ptr.vmem [resolvable:$true] %s406
      %409 = dma.vmem_to_hbm [thread:$0]  %s407, 128, %s4, [#allocation4]
    $region33: #{tpu_custom_call.1} parent=1 // pred_fallthru
      _
    // Predicated region
    $region34: #{tpu_custom_call.1} parent=1 // pred_check
      _
    $region35: #{tpu_custom_call.1} parent=1 // pred_check_branch
      %411 = sbr.rel (0) target = $region37
    $region36: #{tpu_custom_call.1} parent=1 // pred_region
      %412 = dma.done [#allocation4], 128
    $region37: #{tpu_custom_call.1} parent=1 // pred_fallthru
      _
    %413 = vsyncpa [#allocation3], 1
    %414 = vsyncpa [#allocation6], 1
    %415 = vsyncpa [#allocation4], 1

</llo_original>
